<compile_context>
chip_gen: v7x
topology: tpu7x:2x2x1
jax: 0.10.0
libtpu: 0.0.40
codegen_flags: <defaults>
</compile_context>

<pallas_src>
import math

import jax
import jax.numpy as jnp
from jax.experimental import pallas as pl
from jax.experimental.pallas import tpu as pltpu


def _round_up(x, m):
    return ((x + m - 1) // m) * m


def _vmem_capacity_bytes():
    """Physical VMEM per TensorCore (128 MiB on v5e/v6e, 64 MiB on v7x)."""
    try:
        return int(pltpu.get_tpu_info().vmem_capacity_bytes)
    except Exception:
        try:
            kind = jax.devices()[0].device_kind.lower()
        except Exception:
            kind = ""
        return 64 * 1024 * 1024 if "v7" in kind else 128 * 1024 * 1024


def _gelu_exact_f32(g):
    # Exact (erf) GELU in f32 -- matches torch.nn.functional.gelu default.
    return 0.5 * g * (1.0 + jax.lax.erf(g * jnp.float32(0.7071067811865476)))


# ---------------------------------------------------------------------------
# Kernels
# ---------------------------------------------------------------------------

def _geglu_resident_kernel(x_ref, w1_ref, b1_ref, w2t_ref, b2_ref, o_ref):
    """Weight-resident path: all weights stay in VMEM; one fused ff1 matmul."""
    dp = w2t_ref.shape[0]
    x = x_ref[...]                                              # (tm, dp) compute dtype
    # ff1: fused (tm, dp) @ (dp, 2*dp) -> [gate || value], f32 accumulation.
    h = jnp.dot(x, w1_ref[...], preferred_element_type=jnp.float32) + b1_ref[...]
    gate = h[:, :dp]
    value = h[:, dp:]
    y = _gelu_exact_f32(gate) * value
    # TODO(synk): training-mode dropout mask (pltpu.prng_random_bits) not emitted;
    # eval-mode dropout is the identity.
    out = jnp.dot(y.astype(w2t_ref.dtype), w2t_ref[...],
                  preferred_element_type=jnp.float32) + b2_ref[...]
    o_ref[...] = out.astype(o_ref.dtype)


def _geglu_streamed_kernel(x_ref, w1g_ref, b1g_ref, w1v_ref, b1v_ref,
                           w2t_ref, b2_ref, o_ref, acc_ref):
    """Weight-streamed path: hidden dim tiled on the innermost ('arbitrary') axis."""
    k = pl.program_id(1)

    @pl.when(k == 0)
    def _init():
        acc_ref[...] = jnp.zeros_like(acc_ref)

    x = x_ref[...]
    gate = jnp.dot(x, w1g_ref[...], preferred_element_type=jnp.float32) + b1g_ref[...]
    value = jnp.dot(x, w1v_ref[...], preferred_element_type=jnp.float32) + b1v_ref[...]
    y = _gelu_exact_f32(gate) * value
    # TODO(synk): training-mode dropout mask not emitted; eval-mode dropout is identity.
    acc_ref[...] += jnp.dot(y.astype(w2t_ref.dtype), w2t_ref[...],
                            preferred_element_type=jnp.float32)

    @pl.when(k == pl.num_programs(1) - 1)
    def _finalize():
        o_ref[...] = (acc_ref[...] + b2_ref[...]).astype(o_ref.dtype)


# ---------------------------------------------------------------------------
# One-time weight preparation (hoisted out of the hot path)
# ---------------------------------------------------------------------------

def prepare_geglu_params(w1, b1, w2, b2, *, compute_dtype=jnp.bfloat16):
    """w1: [2*dim, dim], b1: [2*dim], w2: [dim, dim], b2: [dim] (PyTorch layout).

    Pre-transposes for row-major `x @ W`, zero-pads the feature dim to a multiple
    of 128 (lane-dense tiles), fuses the ff1 gate/value halves into one
    [dp, 2*dp] operand, and casts matmul operands to `compute_dtype`.
    Biases stay f32.  NOTE: bf16 compute (default) differs from the f32 PyTorch
    reference by up to ~3e-2; pass compute_dtype=jnp.float32 for validation.
    """
    dim = w2.shape[0]
    dp = _round_up(dim, 128)
    pf = dp - dim

    w1g = jnp.pad(jnp.transpose(w1[:dim, :]), ((0, pf), (0, pf)))
    w1v = jnp.pad(jnp.transpose(w1[dim:, :]), ((0, pf), (0, pf)))
    w1f = jnp.concatenate([w1g, w1v], axis=1).astype(compute_dtype)        # [dp, 2*dp]
    b1f = jnp.concatenate([jnp.pad(b1[:dim], (0, pf)),
                           jnp.pad(b1[dim:], (0, pf))]
                          ).reshape(1, 2 * dp).astype(jnp.float32)
    w2t = jnp.pad(jnp.transpose(w2), ((0, pf), (0, pf))).astype(compute_dtype)  # [dp, dp]
    b2r = jnp.pad(b2, (0, pf)).reshape(1, dp).astype(jnp.float32)

    return dict(dim=dim, dp=dp, compute_dtype=jnp.dtype(compute_dtype),
                w1=w1f, b1=b1f, w2t=w2t, b2=b2r)


# ---------------------------------------------------------------------------
# VMEM sizing
# ---------------------------------------------------------------------------

def _vmem_est_resident(tm, dp, cb, ob):
    # Conservative: assume default double-buffered weight/bias blocks even though
    # the resident path requests pl.Buffered(1), so the fallback path also fits.
    weights = 2 * 3 * dp * dp * cb
    biases = 2 * 3 * dp * 4
    io = 2 * tm * dp * cb + 2 * tm * dp * ob          # dbl-buffered x / out tiles
    interm = 4 * tm * dp * 4                          # h/y + compiler temporaries
    return weights + biases + io + interm


def _pick_tn(dp, tm, cb, ob, budget):
    """Largest hidden-dim tile (multiple of 128 dividing dp) fitting the budget."""
    def est(tn):
        w = 6 * dp * tn * cb + 2 * (2 * tn + dp) * 4  # dbl-buffered W1g/W1v/W2t (+biases)
        io = 2 * tm * dp * cb + 2 * tm * dp * ob      # dbl-buffered x / out tiles
        fixed = tm * dp * 4 + 3 * tm * tn * 4         # acc scratch + gate/value/y
        return w + io + fixed

    for tn in range(dp, 0, -128):
        if dp % tn:
            continue
        e = est(tn)
        if e <= budget:
            return tn, e
    return 128, est(128)                              # fallback: recomputed estimate


# ---------------------------------------------------------------------------
# pallas_call builders
# ---------------------------------------------------------------------------

def _cost(Mp, dp, cb, ob, weight_passes):
    return pl.CostEstimate(
        flops=int(6 * Mp * dp * dp),                  # 3 matmuls, 2*M*dp*dp each
        transcendentals=int(Mp * dp),                 # erf
        bytes_accessed=int(Mp * dp * cb + Mp * dp * ob
                           + weight_passes * 3 * dp * dp * cb + 3 * dp * 4),
    )


def _call_resident(xk, params, tm, Mp, out_dtype, vmem_limit, single_buffer_weights):
    dp = params["dp"]
    cb = params["compute_dtype"].itemsize
    ob = jnp.dtype(out_dtype).itemsize

    def const_spec(shape):
        # Constant block index: fetched once; single buffer halves resident VMEM.
        if single_buffer_weights:
            return pl.BlockSpec(shape, lambda i: (0, 0), pipeline_mode=pl.Buffered(1))
        return pl.BlockSpec(shape, lambda i: (0, 0))

    return pl.pallas_call(
        _geglu_resident_kernel,
        out_shape=jax.ShapeDtypeStruct((Mp, dp), out_dtype),
        grid_spec=pltpu.PrefetchScalarGridSpec(
            num_scalar_prefetch=0,
            grid=(Mp // tm,),
            in_specs=[
                pl.BlockSpec((tm, dp), lambda i: (i, 0)),   # x row block
                const_spec((dp, 2 * dp)),                   # fused W1 [gate||value]
                const_spec((1, 2 * dp)),                    # fused b1
                const_spec((dp, dp)),                       # W2^T
                const_spec((1, dp)),                        # b2
            ],
            out_specs=pl.BlockSpec((tm, dp), lambda i: (i, 0)),
        ),
        compiler_params=pltpu.CompilerParams(
            # NOTE(v7x): row axis marked "parallel" for 2-TC sharding; per-TC VMEM
            # budget (64 MiB) is already used in the residency decision.
            dimension_semantics=("parallel",),
            vmem_limit_bytes=vmem_limit,
        ),
        cost_estimate=_cost(Mp, dp, cb, ob, weight_passes=1),
    )(xk, params["w1"], params["b1"], params["w2t"], params["b2"])


def _call_streamed(xk, params, tm, tn, Mp, out_dtype, vmem_limit):
    dp = params["dp"]
    cb = params["compute_dtype"].itemsize
    ob = jnp.dtype(out_dtype).itemsize
    nk = dp // tn

    return pl.pallas_call(
        _geglu_streamed_kernel,
        out_shape=jax.ShapeDtypeStruct((Mp, dp), out_dtype),
        grid_spec=pltpu.PrefetchScalarGridSpec(
            num_scalar_prefetch=0,
            grid=(Mp // tm, nk),
            in_specs=[
                pl.BlockSpec((tm, dp), lambda i, k: (i, 0)),       # x row block
                pl.BlockSpec((dp, tn), lambda i, k: (0, k)),       # W1 gate column slab
                pl.BlockSpec((1, tn), lambda i, k: (0, k)),        # b1 gate slab
                pl.BlockSpec((dp, tn), lambda i, k: (0, k + nk)),  # W1 value column slab
                pl.BlockSpec((1, tn), lambda i, k: (0, k + nk)),   # b1 value slab
                pl.BlockSpec((tn, dp), lambda i, k: (k, 0)),       # W2^T row slab
                pl.BlockSpec((1, dp), lambda i, k: (0, 0)),        # b2
            ],
            out_specs=pl.BlockSpec((tm, dp), lambda i, k: (i, 0)),
            scratch_shapes=[pltpu.VMEM((tm, dp), jnp.float32)],    # ff2 accumulator
        ),
        compiler_params=pltpu.CompilerParams(
            dimension_semantics=("parallel", "arbitrary"),
            vmem_limit_bytes=vmem_limit,
        ),
        cost_estimate=_cost(Mp, dp, cb, ob, weight_passes=Mp // tm),
    )(xk, params["w1"], params["b1"], params["w1"], params["b1"],
      params["w2t"], params["b2"])


# ---------------------------------------------------------------------------
# Public wrapper
# ---------------------------------------------------------------------------

def geglu_pallas(x, params, *, tm=None, force_streamed=False):
    """x: [..., dim].  params: prepare_geglu_params() output.  Returns x.dtype."""
    dim, dp = params["dim"], params["dp"]
    cdt = params["compute_dtype"]
    cb = cdt.itemsize
    out_dtype = x.dtype
    ob = jnp.dtype(out_dtype).itemsize

    orig_shape = x.shape
    x2 = x.reshape(-1, dim)
    M = x2.shape[0]

    cap = _vmem_capacity_bytes()
    budget = int(0.75 * cap)       # ~96 MiB on 128-MiB parts, ~48 MiB on v7x (per-TC)
    vmem_limit = int(0.85 * cap)   # never the whole VMEM: headroom for Mosaic scratch

    user_tm = tm is not None
    if not user_tm:
        tm = min(256, _round_up(max(M, 1), 16))
    Mp = _round_up(M, tm)

    resident = (not force_streamed) and _vmem_est_resident(tm, dp, cb, ob) <= budget

    tn = dp
    if not resident:
        if not user_tm and cap >= 120 * 1024 * 1024 and M >= 512:
            tm = 512               # streamed regime on 128-MiB parts: lift FLOP/byte
            Mp = _round_up(M, tm)
        tn, _ = _pick_tn(dp, tm, cb, ob, budget)

    # Cast first, then pad; skip both entirely in the aligned common case.
    if x2.dtype != cdt:
        x2 = x2.astype(cdt)
    pr, pc = Mp - M, dp - dim
    xk = jnp.pad(x2, ((0, pr), (0, pc))) if (pr or pc) else x2

    if resident:
        try:
            out = _call_resident(xk, params, tm, Mp, out_dtype, vmem_limit,
                                 single_buffer_weights=True)
        except Exception:
            # pl.Buffered(1) not supported by this toolchain: default buffering
            # (residency estimate already assumed 2 buffers, so this still fits).
            out = _call_resident(xk, params, tm, Mp, out_dtype, vmem_limit,
                                 single_buffer_weights=False)
    else:
        out = _call_streamed(xk, params, tm, tn, Mp, out_dtype, vmem_limit)

    if pr or pc:
        out = out[:M, :dim]
    return out.reshape(orig_shape)


def geglu_reference(x, w1, b1, w2, b2):
    dim = w2.shape[0]
    x2 = x.reshape(-1, dim).astype(jnp.float32)
    h = x2 @ w1.T + b1
    gate, value = h[:, :dim], h[:, dim:]
    g = 0.5 * gate * (1.0 + jax.lax.erf(gate / jnp.sqrt(2.0)))
    y = g * value
    out = y @ w2.T + b2
    return out.reshape(x.shape[:-1] + (dim,))


if __name__ == "__main__":
    batch, seq, dim = 2, 8, 32
    key = jax.random.PRNGKey(0)
    kx, kw1, kb1, kw2, kb2 = jax.random.split(key, 5)

    x = jax.random.normal(kx, (batch, seq, dim), dtype=jnp.float32)

    # ff1: Linear(dim, 2*dim) with PyTorch-style uniform init.
    bound1 = 1.0 / math.sqrt(dim)
    w1 = jax.random.uniform(kw1, (2 * dim, dim), minval=-bound1, maxval=bound1,
                            dtype=jnp.float32)
    b1 = jax.random.uniform(kb1, (2 * dim,), minval=-bound1, maxval=bound1,
                            dtype=jnp.float32)

    # Module-faithful ff2: zero-initialized weight and bias (nn.init.zeros_).
    w2_zero = jnp.zeros((dim, dim), dtype=jnp.float32)
    b2_zero = jnp.zeros((dim,), dtype=jnp.float32)

    params = prepare_geglu_params(w1, b1, w2_zero, b2_zero)       # bf16 compute path
    out = jax.block_until_ready(geglu_pallas(x, params))
    ref = geglu_reference(x, w1, b1, w2_zero, b2_zero)
    assert out.shape == x.shape and out.dtype == x.dtype
    assert jnp.allclose(out, ref, atol=3e-2, rtol=3e-2)

    # Non-zero ff2 so the output projection is actually exercised.
    w2 = jax.random.uniform(kw2, (dim, dim), minval=-bound1, maxval=bound1,
                            dtype=jnp.float32)
    b2 = jax.random.uniform(kb2, (dim,), minval=-bound1, maxval=bound1,
                            dtype=jnp.float32)
    ref2 = geglu_reference(x, w1, b1, w2, b2)

    # f32 compute path (validation-only; tight tolerance) on the resident kernel.
    p_f32 = prepare_geglu_params(w1, b1, w2, b2, compute_dtype=jnp.float32)
    out_f32 = jax.block_until_ready(geglu_pallas(x, p_f32))
    assert jnp.allclose(out_f32, ref2, atol=1e-4, rtol=1e-4)

    # bf16 compute with f32 activations (resident path, f32 output).
    p_bf16 = prepare_geglu_params(w1, b1, w2, b2, compute_dtype=jnp.bfloat16)
    out_bf = jax.block_until_ready(geglu_pallas(x, p_bf16))
    assert jnp.allclose(out_bf, ref2, atol=3e-2, rtol=3e-2)

    # bf16 activations -> bf16 kernel output (exercises the narrow-output path).
    xb = x.astype(jnp.bfloat16)
    out_b16 = jax.block_until_ready(geglu_pallas(xb, p_bf16))
    assert out_b16.dtype == jnp.bfloat16
    assert jnp.allclose(out_b16.astype(jnp.float32), ref2, atol=5e-2, rtol=5e-2)

    # Force the weight-streamed kernel so both code paths are compile-checked.
    out_s = jax.block_until_ready(geglu_pallas(x, p_bf16, force_streamed=True))
    assert jnp.allclose(out_s, ref2, atol=3e-2, rtol=3e-2)

    print("KERNEL_OK")
</pallas_src>

<mosaic_0001>
module attributes {stable_mosaic.version = 11 : i64} {
  func.func @_geglu_resident_kernel(%arg0: i32, %arg1: memref<16x128xbf16, #tpu.memory_space<vmem>>, %arg2: memref<128x256xbf16, #tpu.memory_space<vmem>>, %arg3: memref<1x256xf32, #tpu.memory_space<vmem>>, %arg4: memref<128x128xbf16, #tpu.memory_space<vmem>>, %arg5: memref<1x128xf32, #tpu.memory_space<vmem>>, %arg6: memref<16x128xf32, #tpu.memory_space<vmem>>) attributes {dimension_semantics = [#tpu.dimension_semantics<parallel>], iteration_bounds = array<i64: 1>, scalar_prefetch = 0 : i64, scratch_operands = 0 : i64, tpu.core_type = #tpu.core_type<tc>, window_params = [{transform_indices = @transform_0, window_bounds = array<i64: 16, 128>}, {pipeline_mode = #tpu.pipeline_mode<synchronous>, transform_indices = @transform_1, window_bounds = array<i64: 128, 256>}, {pipeline_mode = #tpu.pipeline_mode<synchronous>, transform_indices = @transform_2, window_bounds = array<i64: 1, 256>}, {pipeline_mode = #tpu.pipeline_mode<synchronous>, transform_indices = @transform_3, window_bounds = array<i64: 128, 128>}, {pipeline_mode = #tpu.pipeline_mode<synchronous>, transform_indices = @transform_4, window_bounds = array<i64: 1, 128>}, {transform_indices = @transform_5, window_bounds = array<i64: 16, 128>}]} {
    %c0 = arith.constant 0 : index
    %c0_0 = arith.constant 0 : index
    %0 = vector.load %arg1[%c0, %c0_0] : memref<16x128xbf16, #tpu.memory_space<vmem>>, vector<16x128xbf16>
    %c0_1 = arith.constant 0 : index
    %c0_2 = arith.constant 0 : index
    %1 = vector.load %arg2[%c0_1, %c0_2] : memref<128x256xbf16, #tpu.memory_space<vmem>>, vector<128x256xbf16>
    %cst = arith.constant dense<0.000000e+00> : vector<16x256xf32>
    %2 = tpu.matmul %0, %1, %cst {dimension_numbers = #tpu.dot_dimension_numbers<[1], [0], [0], [1], [0, 0, 1, 1], [], []>} : vector<16x128xbf16>, vector<128x256xbf16>, vector<16x256xf32> -> vector<16x256xf32>
    %c0_3 = arith.constant 0 : index
    %c0_4 = arith.constant 0 : index
    %3 = vector.load %arg3[%c0_3, %c0_4] : memref<1x256xf32, #tpu.memory_space<vmem>>, vector<1x256xf32>
    %4 = vector.broadcast %3 : vector<1x256xf32> to vector<16x256xf32>
    %5 = arith.addf %2, %4 : vector<16x256xf32>
    %6 = vector.extract_strided_slice %5 {offsets = [0, 0], sizes = [16, 128], strides = [1, 1]} : vector<16x256xf32> to vector<16x128xf32>
    %7 = vector.extract_strided_slice %5 {offsets = [0, 128], sizes = [16, 128], strides = [1, 1]} : vector<16x256xf32> to vector<16x128xf32>
    %cst_5 = arith.constant 5.000000e-01 : f32
    %8 = vector.broadcast %cst_5 : f32 to vector<16x128xf32>
    %9 = arith.mulf %8, %6 : vector<16x128xf32>
    %cst_6 = arith.constant 0.707106769 : f32
    %10 = vector.broadcast %cst_6 : f32 to vector<16x128xf32>
    %11 = arith.mulf %6, %10 : vector<16x128xf32>
    %12 = math.erf %11 : vector<16x128xf32>
    %cst_7 = arith.constant 1.000000e+00 : f32
    %13 = vector.broadcast %cst_7 : f32 to vector<16x128xf32>
    %14 = arith.addf %13, %12 : vector<16x128xf32>
    %15 = arith.mulf %9, %14 : vector<16x128xf32>
    %16 = arith.mulf %15, %7 : vector<16x128xf32>
    %17 = arith.truncf %16 : vector<16x128xf32> to vector<16x128xbf16>
    %c0_8 = arith.constant 0 : index
    %c0_9 = arith.constant 0 : index
    %18 = vector.load %arg4[%c0_8, %c0_9] : memref<128x128xbf16, #tpu.memory_space<vmem>>, vector<128x128xbf16>
    %cst_10 = arith.constant dense<0.000000e+00> : vector<16x128xf32>
    %19 = tpu.matmul %17, %18, %cst_10 {dimension_numbers = #tpu.dot_dimension_numbers<[1], [0], [0], [1], [0, 0, 1, 1], [], []>} : vector<16x128xbf16>, vector<128x128xbf16>, vector<16x128xf32> -> vector<16x128xf32>
    %c0_11 = arith.constant 0 : index
    %c0_12 = arith.constant 0 : index
    %20 = vector.load %arg5[%c0_11, %c0_12] : memref<1x128xf32, #tpu.memory_space<vmem>>, vector<1x128xf32>
    %21 = vector.broadcast %20 : vector<1x128xf32> to vector<16x128xf32>
    %22 = arith.addf %19, %21 : vector<16x128xf32>
    %c0_13 = arith.constant 0 : index
    %c0_14 = arith.constant 0 : index
    %23 = vector.load %arg6[%c0_13, %c0_14] : memref<16x128xf32, #tpu.memory_space<vmem>>, vector<16x128xf32>
    tpu.vector_store %arg6[%c0_13, %c0_14], %22 {strides = array<i32>} : memref<16x128xf32, #tpu.memory_space<vmem>>, vector<16x128xf32>,
    return
  }
  func.func @transform_0(%arg0: i32) -> (i32, i32) {
    %c0_i32 = arith.constant 0 : i32
    %c0_i32_0 = arith.constant 0 : i32
    return %arg0, %c0_i32 : i32, i32
  }
  func.func @transform_1(%arg0: i32) -> (i32, i32) {
    %c0_i32 = arith.constant 0 : i32
    %c0_i32_0 = arith.constant 0 : i32
    %c0_i32_1 = arith.constant 0 : i32
    return %c0_i32, %c0_i32_0 : i32, i32
  }
  func.func @transform_2(%arg0: i32) -> (i32, i32) {
    %c0_i32 = arith.constant 0 : i32
    %c0_i32_0 = arith.constant 0 : i32
    %c0_i32_1 = arith.constant 0 : i32
    return %c0_i32, %c0_i32_0 : i32, i32
  }
  func.func @transform_3(%arg0: i32) -> (i32, i32) {
    %c0_i32 = arith.constant 0 : i32
    %c0_i32_0 = arith.constant 0 : i32
    %c0_i32_1 = arith.constant 0 : i32
    return %c0_i32, %c0_i32_0 : i32, i32
  }
  func.func @transform_4(%arg0: i32) -> (i32, i32) {
    %c0_i32 = arith.constant 0 : i32
    %c0_i32_0 = arith.constant 0 : i32
    %c0_i32_1 = arith.constant 0 : i32
    return %c0_i32, %c0_i32_0 : i32, i32
  }
  func.func @transform_5(%arg0: i32) -> (i32, i32) {
    %c0_i32 = arith.constant 0 : i32
    %c0_i32_0 = arith.constant 0 : i32
    return %arg0, %c0_i32 : i32, i32
  }
}

module attributes {stable_mosaic.version = 11 : i64} {
  func.func @_geglu_resident_kernel(%arg0: i32, %arg1: memref<16x128xbf16, #tpu.memory_space<vmem>>, %arg2: memref<128x256xbf16, #tpu.memory_space<vmem>>, %arg3: memref<1x256xf32, #tpu.memory_space<vmem>>, %arg4: memref<128x128xbf16, #tpu.memory_space<vmem>>, %arg5: memref<1x128xf32, #tpu.memory_space<vmem>>, %arg6: memref<16x128xf32, #tpu.memory_space<vmem>>) attributes {dimension_semantics = [#tpu.dimension_semantics<parallel>], iteration_bounds = array<i64: 1>, scalar_prefetch = 0 : i64, scratch_operands = 0 : i64, tpu.core_type = #tpu.core_type<tc>, window_params = [{transform_indices = @transform_0, window_bounds = array<i64: 16, 128>}, {pipeline_mode = #tpu.pipeline_mode<synchronous>, transform_indices = @transform_1, window_bounds = array<i64: 128, 256>}, {pipeline_mode = #tpu.pipeline_mode<synchronous>, transform_indices = @transform_2, window_bounds = array<i64: 1, 256>}, {pipeline_mode = #tpu.pipeline_mode<synchronous>, transform_indices = @transform_3, window_bounds = array<i64: 128, 128>}, {pipeline_mode = #tpu.pipeline_mode<synchronous>, transform_indices = @transform_4, window_bounds = array<i64: 1, 128>}, {transform_indices = @transform_5, window_bounds = array<i64: 16, 128>}]} {
    %c0 = arith.constant 0 : index
    %c0_0 = arith.constant 0 : index
    %0 = vector.load %arg1[%c0, %c0_0] : memref<16x128xbf16, #tpu.memory_space<vmem>>, vector<16x128xbf16>
    %c0_1 = arith.constant 0 : index
    %c0_2 = arith.constant 0 : index
    %1 = vector.load %arg2[%c0_1, %c0_2] : memref<128x256xbf16, #tpu.memory_space<vmem>>, vector<128x256xbf16>
    %cst = arith.constant dense<0.000000e+00> : vector<16x256xf32>
    %2 = tpu.matmul %0, %1, %cst {dimension_numbers = #tpu.dot_dimension_numbers<[1], [0], [0], [1], [0, 0, 1, 1], [], []>} : vector<16x128xbf16>, vector<128x256xbf16>, vector<16x256xf32> -> vector<16x256xf32>
    %c0_3 = arith.constant 0 : index
    %c0_4 = arith.constant 0 : index
    %3 = vector.load %arg3[%c0_3, %c0_4] : memref<1x256xf32, #tpu.memory_space<vmem>>, vector<1x256xf32>
    %4 = vector.broadcast %3 : vector<1x256xf32> to vector<16x256xf32>
    %5 = arith.addf %2, %4 : vector<16x256xf32>
    %6 = vector.extract_strided_slice %5 {offsets = [0, 0], sizes = [16, 128], strides = [1, 1]} : vector<16x256xf32> to vector<16x128xf32>
    %7 = vector.extract_strided_slice %5 {offsets = [0, 128], sizes = [16, 128], strides = [1, 1]} : vector<16x256xf32> to vector<16x128xf32>
    %cst_5 = arith.constant 5.000000e-01 : f32
    %8 = vector.broadcast %cst_5 : f32 to vector<16x128xf32>
    %9 = arith.mulf %8, %6 : vector<16x128xf32>
    %cst_6 = arith.constant 0.707106769 : f32
    %10 = vector.broadcast %cst_6 : f32 to vector<16x128xf32>
    %11 = arith.mulf %6, %10 : vector<16x128xf32>
    %12 = math.erf %11 : vector<16x128xf32>
    %cst_7 = arith.constant 1.000000e+00 : f32
    %13 = vector.broadcast %cst_7 : f32 to vector<16x128xf32>
    %14 = arith.addf %13, %12 : vector<16x128xf32>
    %15 = arith.mulf %9, %14 : vector<16x128xf32>
    %16 = arith.mulf %15, %7 : vector<16x128xf32>
    %17 = arith.truncf %16 : vector<16x128xf32> to vector<16x128xbf16>
    %c0_8 = arith.constant 0 : index
    %c0_9 = arith.constant 0 : index
    %18 = vector.load %arg4[%c0_8, %c0_9] : memref<128x128xbf16, #tpu.memory_space<vmem>>, vector<128x128xbf16>
    %cst_10 = arith.constant dense<0.000000e+00> : vector<16x128xf32>
    %19 = tpu.matmul %17, %18, %cst_10 {dimension_numbers = #tpu.dot_dimension_numbers<[1], [0], [0], [1], [0, 0, 1, 1], [], []>} : vector<16x128xbf16>, vector<128x128xbf16>, vector<16x128xf32> -> vector<16x128xf32>
    %c0_11 = arith.constant 0 : index
    %c0_12 = arith.constant 0 : index
    %20 = vector.load %arg5[%c0_11, %c0_12] : memref<1x128xf32, #tpu.memory_space<vmem>>, vector<1x128xf32>
    %21 = vector.broadcast %20 : vector<1x128xf32> to vector<16x128xf32>
    %22 = arith.addf %19, %21 : vector<16x128xf32>
    %c0_13 = arith.constant 0 : index
    %c0_14 = arith.constant 0 : index
    %23 = vector.load %arg6[%c0_13, %c0_14] : memref<16x128xf32, #tpu.memory_space<vmem>>, vector<16x128xf32>
    tpu.vector_store %arg6[%c0_13, %c0_14], %22 {strides = array<i32>} : memref<16x128xf32, #tpu.memory_space<vmem>>, vector<16x128xf32>,
    return
  }
  func.func @transform_0(%arg0: i32) -> (i32, i32) {
    %c0_i32 = arith.constant 0 : i32
    %c0_i32_0 = arith.constant 0 : i32
    return %arg0, %c0_i32 : i32, i32
  }
  func.func @transform_1(%arg0: i32) -> (i32, i32) {
    %c0_i32 = arith.constant 0 : i32
    %c0_i32_0 = arith.constant 0 : i32
    %c0_i32_1 = arith.constant 0 : i32
    return %c0_i32, %c0_i32_0 : i32, i32
  }
  func.func @transform_2(%arg0: i32) -> (i32, i32) {
    %c0_i32 = arith.constant 0 : i32
    %c0_i32_0 = arith.constant 0 : i32
    %c0_i32_1 = arith.constant 0 : i32
    return %c0_i32, %c0_i32_0 : i32, i32
  }
  func.func @transform_3(%arg0: i32) -> (i32, i32) {
    %c0_i32 = arith.constant 0 : i32
    %c0_i32_0 = arith.constant 0 : i32
    %c0_i32_1 = arith.constant 0 : i32
    return %c0_i32, %c0_i32_0 : i32, i32
  }
  func.func @transform_4(%arg0: i32) -> (i32, i32) {
    %c0_i32 = arith.constant 0 : i32
    %c0_i32_0 = arith.constant 0 : i32
    %c0_i32_1 = arith.constant 0 : i32
    return %c0_i32, %c0_i32_0 : i32, i32
  }
  func.func @transform_5(%arg0: i32) -> (i32, i32) {
    %c0_i32 = arith.constant 0 : i32
    %c0_i32_0 = arith.constant 0 : i32
    return %arg0, %c0_i32 : i32, i32
  }
}

</mosaic_0001>

<llo_original>
// kernel: tpu_custom_call.1
$region0: #{tpu_custom_call.1}
  #allocation0 [shape = 'u32[]', space=smem, size = 0x4, offset = 0x4, fixed_abs, tag = 'smem constant byte address 0x4 - core index']
  #allocation1 [shape = 'u32[144,128]{1,0:T(1,128)}', space=vmem, size = 0x12000, scoped, tag = 'internal scratch']
  %s0 = inlined_call_operand.hbm [shape: bf16[16,128], index: 0, kind: input, shape index: {}]
  %s1 = inlined_call_operand.hbm [shape: bf16[128,256], index: 1, kind: input, shape index: {}]
  %s2 = inlined_call_operand.hbm [shape: f32[1,256], index: 2, kind: input, shape index: {}]
  %s3 = inlined_call_operand.hbm [shape: bf16[128,128], index: 3, kind: input, shape index: {}]
  %s4 = inlined_call_operand.hbm [shape: f32[1,128], index: 4, kind: input, shape index: {}]
  %s5 = inlined_call_operand.hbm [shape: f32[16,128], index: 5, kind: output, shape index: {}]
  %s6 = sld [smem:[#allocation0]]
  $region50: #{tpu_custom_call.1} parent=0
    _
  %s8 = ssub.s32 1, %s6
  %s9 = scalar_select 0, %s8, %s6
  $region1: #{tpu_custom_call.1} parent=0
    #allocation2 [shape = 'u8[4096]{0}', space=vmem, size = 0x1000, scoped, tag = 'input window, operand 0, single buffered']
    #allocation3 [shape = 's32[1]{0}', space=sflag, size = 0x4, scoped, tag = 'scoped memory for tpu_custom_call.1']
    #allocation4 [shape = 's32[1]{0}', space=sflag, size = 0x4, scoped, tag = 'scoped memory for tpu_custom_call.1']
    #allocation5 [shape = 'u8[65536]{0}', space=vmem, size = 0x10000, scoped, tag = 'input window, operand 1, single buffered']
    #allocation6 [shape = 's32[1]{0}', space=sflag, size = 0x4, scoped, tag = 'scoped memory for tpu_custom_call.1']
    #allocation7 [shape = 'u8[1024]{0}', space=vmem, size = 0x400, scoped, tag = 'input window, operand 2, single buffered']
    #allocation8 [shape = 'u8[32768]{0}', space=vmem, size = 0x8000, scoped, tag = 'input window, operand 3, single buffered']
    #allocation9 [shape = 's32[1]{0}', space=sflag, size = 0x4, scoped, tag = 'scoped memory for tpu_custom_call.1']
    #allocation10 [shape = 'u8[512]{0}', space=vmem, size = 0x400, scoped, tag = 'input window, operand 4, single buffered']
    #allocation11 [shape = 'u8[8192]{0}', space=vmem, size = 0x2000, scoped, tag = 'output window, operand 0, single buffered']
    %10 = vsyncpa [#allocation3], 0
    %11 = vsyncpa [#allocation6], 0
    %12 = vsyncpa [#allocation9], 0
    %13 = vsyncpa [#allocation4], 0
    // Predicated region
    $region2: #{tpu_custom_call.1} parent=1 // pred_check
      _
    $region3: #{tpu_custom_call.1} parent=1 // pred_check_branch
      %15 = sbr.rel (0) target = $region5
    $region4: #{tpu_custom_call.1} parent=1 // pred_region
      %s17 = ssub.s32 128, 128
      %18 = vsyncadd [#allocation3], %s17
      %s19 = sshll.u32 [#allocation2], 4
      %s20 = int_to_ptr.vmem [resolvable:$true] %s19
      %25 = dma.hbm_to_vmem [thread:$0]  %s0, 128, %s20, [#allocation3], 64, 64, 4
    $region5: #{tpu_custom_call.1} parent=1 // pred_fallthru
      _
    // Predicated region
    $region6: #{tpu_custom_call.1} parent=1 // pred_check
      _
    $region7: #{tpu_custom_call.1} parent=1 // pred_check_branch
      %27 = sbr.rel (0) target = $region9
    $region8: #{tpu_custom_call.1} parent=1 // pred_region
      %s29 = ssub.s32 2048, 2048
      %30 = vsyncadd [#allocation6], %s29
      %s31 = sshll.u32 [#allocation5], 4
      %s32 = int_to_ptr.vmem [resolvable:$true] %s31
      %37 = dma.hbm_to_vmem [thread:$0]  %s1, 2048, %s32, [#allocation6], 128, 128, 8
    $region9: #{tpu_custom_call.1} parent=1 // pred_fallthru
      _
    // Predicated region
    $region10: #{tpu_custom_call.1} parent=1 // pred_check
      _
    $region11: #{tpu_custom_call.1} parent=1 // pred_check_branch
      %39 = sbr.rel (0) target = $region13
    $region12: #{tpu_custom_call.1} parent=1 // pred_region
      %s41 = ssub.s32 32, 32
      %42 = vsyncadd [#allocation6], %s41
      %s44 = sshll.u32 [#allocation7], 4
      %s45 = int_to_ptr.vmem [resolvable:$true] %s44
      %47 = dma.hbm_to_vmem [thread:$0]  %s2, 32, %s45, [#allocation6]
    $region13: #{tpu_custom_call.1} parent=1 // pred_fallthru
      _
    // Predicated region
    $region14: #{tpu_custom_call.1} parent=1 // pred_check
      _
    $region15: #{tpu_custom_call.1} parent=1 // pred_check_branch
      %49 = sbr.rel (0) target = $region17
    $region16: #{tpu_custom_call.1} parent=1 // pred_region
      %s51 = ssub.s32 1024, 1024
      %52 = vsyncadd [#allocation9], %s51
      %s53 = sshll.u32 [#allocation8], 4
      %s54 = int_to_ptr.vmem [resolvable:$true] %s53
      %59 = dma.hbm_to_vmem [thread:$0]  %s3, 1024, %s54, [#allocation9], 64, 64, 4
    $region17: #{tpu_custom_call.1} parent=1 // pred_fallthru
      _
    // Predicated region
    $region18: #{tpu_custom_call.1} parent=1 // pred_check
      _
    $region19: #{tpu_custom_call.1} parent=1 // pred_check_branch
      %61 = sbr.rel (0) target = $region21
    $region20: #{tpu_custom_call.1} parent=1 // pred_region
      %s63 = ssub.s32 16, 16
      %64 = vsyncadd [#allocation9], %s63
      %s66 = sshll.u32 [#allocation10], 4
      %s67 = int_to_ptr.vmem [resolvable:$true] %s66
      %69 = dma.hbm_to_vmem [thread:$0]  %s4, 16, %s67, [#allocation9]
    $region21: #{tpu_custom_call.1} parent=1 // pred_fallthru
      _
    // Predicated region
    $region22: #{tpu_custom_call.1} parent=1 // pred_check
      _
    $region23: #{tpu_custom_call.1} parent=1 // pred_check_branch
      %71 = sbr.rel (0) target = $region25
    $region24: #{tpu_custom_call.1} parent=1 // pred_region
      %72 = dma.done [#allocation3], 128
    $region25: #{tpu_custom_call.1} parent=1 // pred_fallthru
      _
    // Predicated region
    $region26: #{tpu_custom_call.1} parent=1 // pred_check
      _
    $region27: #{tpu_custom_call.1} parent=1 // pred_check_branch
      %74 = sbr.rel (0) target = $region29
    $region28: #{tpu_custom_call.1} parent=1 // pred_region
      %75 = dma.done [#allocation6], 2048
    $region29: #{tpu_custom_call.1} parent=1 // pred_fallthru
      _
    // Predicated region
    $region30: #{tpu_custom_call.1} parent=1 // pred_check
      _
    $region31: #{tpu_custom_call.1} parent=1 // pred_check_branch
      %77 = sbr.rel (0) target = $region33
    $region32: #{tpu_custom_call.1} parent=1 // pred_region
      %78 = dma.done [#allocation6], 32
    $region33: #{tpu_custom_call.1} parent=1 // pred_fallthru
      _
    // Predicated region
    $region34: #{tpu_custom_call.1} parent=1 // pred_check
      _
    $region35: #{tpu_custom_call.1} parent=1 // pred_check_branch
      %80 = sbr.rel (0) target = $region37
    $region36: #{tpu_custom_call.1} parent=1 // pred_region
      %81 = dma.done [#allocation9], 1024
    $region37: #{tpu_custom_call.1} parent=1 // pred_fallthru
      _
    // Predicated region
    $region38: #{tpu_custom_call.1} parent=1 // pred_check
      _
    $region39: #{tpu_custom_call.1} parent=1 // pred_check_branch
      %83 = sbr.rel (0) target = $region41
    $region40: #{tpu_custom_call.1} parent=1 // pred_region
      %84 = dma.done [#allocation9], 16
    $region41: #{tpu_custom_call.1} parent=1 // pred_fallthru
      _
    %v86 = vld [vmem:[#allocation2] sm:$0xf]
    %v87 = vld [vmem:[#allocation2 + $0x4] sm:$0xf]
    %v88 = vld [vmem:[#allocation5] sm:$0xff]
    %v89 = vld [vmem:[#allocation5 + $0x8] sm:$0xff]
    %v90 = vld [vmem:[#allocation5 + $0x10] sm:$0xff]
    %v91 = vld [vmem:[#allocation5 + $0x18] sm:$0xff]
    %v92 = vld [vmem:[#allocation5 + $0x20] sm:$0xff]
    %v93 = vld [vmem:[#allocation5 + $0x28] sm:$0xff]
    %v94 = vld [vmem:[#allocation5 + $0x30] sm:$0xff]
    %v95 = vld [vmem:[#allocation5 + $0x38] sm:$0xff]
    %v96 = vld [vmem:[#allocation5 + $0x40] sm:$0xff]
    %v97 = vld [vmem:[#allocation5 + $0x48] sm:$0xff]
    %v98 = vld [vmem:[#allocation5 + $0x50] sm:$0xff]
    %v99 = vld [vmem:[#allocation5 + $0x58] sm:$0xff]
    %v100 = vld [vmem:[#allocation5 + $0x60] sm:$0xff]
    %v101 = vld [vmem:[#allocation5 + $0x68] sm:$0xff]
    %v102 = vld [vmem:[#allocation5 + $0x70] sm:$0xff]
    %v103 = vld [vmem:[#allocation5 + $0x78] sm:$0xff]
    %v104 = vld [vmem:[#allocation7] sm:$0x3]
    %v106 = vlaneseq
    %v107 = vshrl.u32 %v106, 7
    %v108 = vsub.s32 0, %v107
    %v109 = vrot.slane %v104, %v108
    %v110 = vlaneseq
    %v111 = vshrl.u32 %v110, 7
    %v112 = vsub.s32 1, %v111
    %v113 = vrot.slane %v104, %v112
    %v118 = vunpack.c.l.b16 %v86
    %v119 = vunpack.c.l.b16 %v87
    %v120 = vpack.c.b16 %v119, %v118
    %v138 = vunpack.c.l.b16 %v88
    %v139 = vunpack.c.h.b16 %v88
    %v140 = vunpack.c.l.b16 %v89
    %v141 = vunpack.c.h.b16 %v89
    %v142 = vunpack.c.l.b16 %v90
    %v143 = vunpack.c.h.b16 %v90
    %v144 = vunpack.c.l.b16 %v91
    %v145 = vunpack.c.h.b16 %v91
    %v146 = vunpack.c.l.b16 %v92
    %v147 = vunpack.c.h.b16 %v92
    %v148 = vunpack.c.l.b16 %v93
    %v149 = vunpack.c.h.b16 %v93
    %v150 = vunpack.c.l.b16 %v94
    %v151 = vunpack.c.h.b16 %v94
    %v152 = vunpack.c.l.b16 %v95
    %v153 = vunpack.c.h.b16 %v95
    %v154 = vunpack.c.l.b16 %v96
    %v155 = vunpack.c.h.b16 %v96
    %v156 = vunpack.c.l.b16 %v97
    %v157 = vunpack.c.h.b16 %v97
    %v158 = vunpack.c.l.b16 %v98
    %v159 = vunpack.c.h.b16 %v98
    %v160 = vunpack.c.l.b16 %v99
    %v161 = vunpack.c.h.b16 %v99
    %v162 = vunpack.c.l.b16 %v100
    %v163 = vunpack.c.h.b16 %v100
    %v164 = vunpack.c.l.b16 %v101
    %v165 = vunpack.c.h.b16 %v101
    %v166 = vunpack.c.l.b16 %v102
    %v167 = vunpack.c.h.b16 %v102
    %v168 = vunpack.c.l.b16 %v103
    %v169 = vunpack.c.h.b16 %v103
    %v170 = vpack.c.b16 %v140, %v138
    %v171 = vpack.c.b16 %v141, %v139
    %v172 = vpack.c.b16 %v144, %v142
    %v173 = vpack.c.b16 %v145, %v143
    %v174 = vpack.c.b16 %v148, %v146
    %v175 = vpack.c.b16 %v149, %v147
    %v176 = vpack.c.b16 %v152, %v150
    %v177 = vpack.c.b16 %v153, %v151
    %v178 = vpack.c.b16 %v156, %v154
    %v179 = vpack.c.b16 %v157, %v155
    %v180 = vpack.c.b16 %v160, %v158
    %v181 = vpack.c.b16 %v161, %v159
    %v182 = vpack.c.b16 %v164, %v162
    %v183 = vpack.c.b16 %v165, %v163
    %v184 = vpack.c.b16 %v168, %v166
    %v185 = vpack.c.b16 %v169, %v167
    %202 = vmatprep.subr.bf16.mxu0 %v171
    %203 = vmatpush1.bf16.msra.mxu0 %v170
    %204 = vmatprep.subr.bf16.mxu0 %v173
    %205 = vmatpush1.bf16.msra.mxu0 %v172
    %206 = vmatprep.subr.bf16.mxu0 %v175
    %207 = vmatpush1.bf16.msra.mxu0 %v174
    %208 = vmatprep.subr.bf16.mxu0 %v177
    %209 = vmatpush1.bf16.msra.mxu0 %v176
    %210 = vmatprep.subr.bf16.mxu0 %v179
    %211 = vmatpush1.bf16.msra.mxu0 %v178
    %212 = vmatprep.subr.bf16.mxu0 %v181
    %213 = vmatpush1.bf16.msra.mxu0 %v180
    %214 = vmatprep.subr.bf16.mxu0 %v183
    %215 = vmatpush1.bf16.msra.mxu0 %v182
    %216 = vmatprep.subr.bf16.mxu0 %v185
    %217 = vmatpush1.bf16.msra.mxu0 %v184
    %218 = vmatprep.subr.bf16.mxu0 0
    %219 = vmatpush1.bf16.msra.mxu0 0
    %220 = vmatprep.subr.bf16.mxu0 0
    %221 = vmatpush1.bf16.msra.mxu0 0
    %222 = vmatprep.subr.bf16.mxu0 0
    %223 = vmatpush1.bf16.msra.mxu0 0
    %224 = vmatprep.subr.bf16.mxu0 0
    %225 = vmatpush1.bf16.msra.mxu0 0
    %226 = vmatprep.subr.bf16.mxu0 0
    %227 = vmatpush1.bf16.msra.mxu0 0
    %228 = vmatprep.subr.bf16.mxu0 0
    %229 = vmatpush1.bf16.msra.mxu0 0
    %230 = vmatprep.subr.bf16.mxu0 0
    %231 = vmatpush1.bf16.msra.mxu0 0
    %232 = vmatprep.subr.bf16.mxu0 0
    %233 = vmatpush1.bf16.msra.mxu0 0
    %234 = vmatprep.mubr.bf16.mxu0 0
    %235 = vmatmul.mubr.bf16.gmra.mrb[0].mxu0 %v120
    %v236 = vpop.f32.mrb[0].mxu0
    %v237 = vadd.f32 %v109, %v236
    %v238 = vpop.f32.mrb[0].mxu0
    %v239 = vadd.f32 %v113, %v238
    %v240 = vpop.f32.mrb[0].mxu0
    %v241 = vadd.f32 %v109, %v240
    %v242 = vpop.f32.mrb[0].mxu0
    %v243 = vadd.f32 %v113, %v242
    %244 = vdwg.mxu0
    %v245 = vmul.f32 %v237, 0.5
    %v246 = vmul.f32 %v241, 0.5
    %v247 = vmul.f32 %v237, 0.70710677
    %v248 = vmul.f32 %v241, 0.70710677
    %v249 = verf.f32.pop %v247
    %v250 = verf.f32.pop %v248
    %v251 = vadd.f32 %v249, 1.0
    %v252 = vadd.f32 %v250, 1.0
    %v253 = vmul.f32 %v245, %v251
    %v254 = vmul.f32 %v246, %v252
    %v255 = vmul.f32 %v253, %v239
    %v256 = vmul.f32 %v254, %v243
    %v257 = vpack.c.bf16 %v256, %v255
    %v258 = vld [vmem:[#allocation8] sm:$0xf]
    %v259 = vld [vmem:[#allocation8 + $0x4] sm:$0xf]
    %v260 = vld [vmem:[#allocation8 + $0x8] sm:$0xf]
    %v261 = vld [vmem:[#allocation8 + $0xc] sm:$0xf]
    %v262 = vld [vmem:[#allocation8 + $0x10] sm:$0xf]
    %v263 = vld [vmem:[#allocation8 + $0x14] sm:$0xf]
    %v264 = vld [vmem:[#allocation8 + $0x18] sm:$0xf]
    %v265 = vld [vmem:[#allocation8 + $0x1c] sm:$0xf]
    %v266 = vld [vmem:[#allocation8 + $0x20] sm:$0xf]
    %v267 = vld [vmem:[#allocation8 + $0x24] sm:$0xf]
    %v268 = vld [vmem:[#allocation8 + $0x28] sm:$0xf]
    %v269 = vld [vmem:[#allocation8 + $0x2c] sm:$0xf]
    %v270 = vld [vmem:[#allocation8 + $0x30] sm:$0xf]
    %v271 = vld [vmem:[#allocation8 + $0x34] sm:$0xf]
    %v272 = vld [vmem:[#allocation8 + $0x38] sm:$0xf]
    %v273 = vld [vmem:[#allocation8 + $0x3c] sm:$0xf]
    %v274 = vld [vmem:[#allocation10] sm:$0x1]
    %v276 = vlaneseq
    %v277 = vshrl.u32 %v276, 7
    %v278 = vsub.s32 0, %v277
    %v279 = vrot.slane %v274, %v278
    %v297 = vunpack.c.l.b16 %v258
    %v298 = vunpack.c.l.b16 %v259
    %v299 = vunpack.c.l.b16 %v260
    %v300 = vunpack.c.l.b16 %v261
    %v301 = vunpack.c.l.b16 %v262
    %v302 = vunpack.c.l.b16 %v263
    %v303 = vunpack.c.l.b16 %v264
    %v304 = vunpack.c.l.b16 %v265
    %v305 = vunpack.c.l.b16 %v266
    %v306 = vunpack.c.l.b16 %v267
    %v307 = vunpack.c.l.b16 %v268
    %v308 = vunpack.c.l.b16 %v269
    %v309 = vunpack.c.l.b16 %v270
    %v310 = vunpack.c.l.b16 %v271
    %v311 = vunpack.c.l.b16 %v272
    %v312 = vunpack.c.l.b16 %v273
    %v313 = vpack.c.b16 %v298, %v297
    %v314 = vpack.c.b16 %v300, %v299
    %v315 = vpack.c.b16 %v302, %v301
    %v316 = vpack.c.b16 %v304, %v303
    %v317 = vpack.c.b16 %v306, %v305
    %v318 = vpack.c.b16 %v308, %v307
    %v319 = vpack.c.b16 %v310, %v309
    %v320 = vpack.c.b16 %v312, %v311
    %329 = vmatprep.subr.bf16.mxu0 0
    %330 = vmatpush1.bf16.msra.mxu0 %v313
    %331 = vmatprep.subr.bf16.mxu0 0
    %332 = vmatpush1.bf16.msra.mxu0 %v314
    %333 = vmatprep.subr.bf16.mxu0 0
    %334 = vmatpush1.bf16.msra.mxu0 %v315
    %335 = vmatprep.subr.bf16.mxu0 0
    %336 = vmatpush1.bf16.msra.mxu0 %v316
    %337 = vmatprep.subr.bf16.mxu0 0
    %338 = vmatpush1.bf16.msra.mxu0 %v317
    %339 = vmatprep.subr.bf16.mxu0 0
    %340 = vmatpush1.bf16.msra.mxu0 %v318
    %341 = vmatprep.subr.bf16.mxu0 0
    %342 = vmatpush1.bf16.msra.mxu0 %v319
    %343 = vmatprep.subr.bf16.mxu0 0
    %344 = vmatpush1.bf16.msra.mxu0 %v320
    %345 = vmatprep.subr.bf16.mxu0 0
    %346 = vmatpush1.bf16.msra.mxu0 0
    %347 = vmatprep.subr.bf16.mxu0 0
    %348 = vmatpush1.bf16.msra.mxu0 0
    %349 = vmatprep.subr.bf16.mxu0 0
    %350 = vmatpush1.bf16.msra.mxu0 0
    %351 = vmatprep.subr.bf16.mxu0 0
    %352 = vmatpush1.bf16.msra.mxu0 0
    %353 = vmatprep.subr.bf16.mxu0 0
    %354 = vmatpush1.bf16.msra.mxu0 0
    %355 = vmatprep.subr.bf16.mxu0 0
    %356 = vmatpush1.bf16.msra.mxu0 0
    %357 = vmatprep.subr.bf16.mxu0 0
    %358 = vmatpush1.bf16.msra.mxu0 0
    %359 = vmatprep.subr.bf16.mxu0 0
    %360 = vmatpush1.bf16.msra.mxu0 0
    %361 = vmatprep.mubr.bf16.mxu0 0
    %362 = vmatmul.mubr.bf16.gmra.mrb[0].mxu0 %v257
    %v363 = vpop.f32.mrb[0].mxu0
    %v364 = vadd.f32 %v279, %v363
    %v365 = vpop.f32.mrb[0].mxu0
    %v366 = vpop.f32.mrb[0].mxu0
    %v367 = vadd.f32 %v279, %v366
    %v368 = vpop.f32.mrb[0].mxu0
    %369 = vdwg.mxu0
    %370 = vst [vmem:[#allocation11] sm:$0xff] %v364
    %371 = vst [vmem:[#allocation11 + $0x8] sm:$0xff] %v367
    // Predicated region
    $region42: #{tpu_custom_call.1} parent=1 // pred_check
      _
    $region43: #{tpu_custom_call.1} parent=1 // pred_check_branch
      %373 = sbr.rel (0) target = $region45
    $region44: #{tpu_custom_call.1} parent=1 // pred_region
      %s375 = ssub.s32 256, 256
      %376 = vsyncadd [#allocation4], %s375
      %s377 = sshll.u32 [#allocation11], 4
      %s378 = int_to_ptr.vmem [resolvable:$true] %s377
      %383 = dma.vmem_to_hbm [thread:$0]  %s378, 256, %s5, [#allocation4], 128, 128, 8
    $region45: #{tpu_custom_call.1} parent=1 // pred_fallthru
      _
    // Predicated region
    $region46: #{tpu_custom_call.1} parent=1 // pred_check
      _
    $region47: #{tpu_custom_call.1} parent=1 // pred_check_branch
      %385 = sbr.rel (0) target = $region49
    $region48: #{tpu_custom_call.1} parent=1 // pred_region
      %386 = dma.done [#allocation4], 256
    $region49: #{tpu_custom_call.1} parent=1 // pred_fallthru
      _
    %387 = vsyncpa [#allocation3], 1
    %388 = vsyncpa [#allocation6], 1
    %389 = vsyncpa [#allocation9], 1
    %390 = vsyncpa [#allocation4], 1

// kernel: tpu_custom_call.1
$region0: #{tpu_custom_call.1}
  #allocation0 [shape = 'u32[]', space=smem, size = 0x4, offset = 0x4, fixed_abs, tag = 'smem constant byte address 0x4 - core index']
  #allocation1 [shape = 'u32[144,128]{1,0:T(1,128)}', space=vmem, size = 0x12000, scoped, tag = 'internal scratch']
  %s0 = inlined_call_operand.hbm [shape: bf16[16,128], index: 0, kind: input, shape index: {}]
  %s1 = inlined_call_operand.hbm [shape: bf16[128,256], index: 1, kind: input, shape index: {}]
  %s2 = inlined_call_operand.hbm [shape: f32[1,256], index: 2, kind: input, shape index: {}]
  %s3 = inlined_call_operand.hbm [shape: bf16[128,128], index: 3, kind: input, shape index: {}]
  %s4 = inlined_call_operand.hbm [shape: f32[1,128], index: 4, kind: input, shape index: {}]
  %s5 = inlined_call_operand.hbm [shape: f32[16,128], index: 5, kind: output, shape index: {}]
  %s6 = sld [smem:[#allocation0]]
  $region50: #{tpu_custom_call.1} parent=0
    _
  %s8 = ssub.s32 1, %s6
  %s9 = scalar_select 0, %s8, %s6
  $region1: #{tpu_custom_call.1} parent=0
    #allocation2 [shape = 'u8[4096]{0}', space=vmem, size = 0x1000, scoped, tag = 'input window, operand 0, single buffered']
    #allocation3 [shape = 's32[1]{0}', space=sflag, size = 0x4, scoped, tag = 'scoped memory for tpu_custom_call.1']
    #allocation4 [shape = 's32[1]{0}', space=sflag, size = 0x4, scoped, tag = 'scoped memory for tpu_custom_call.1']
    #allocation5 [shape = 'u8[65536]{0}', space=vmem, size = 0x10000, scoped, tag = 'input window, operand 1, single buffered']
    #allocation6 [shape = 's32[1]{0}', space=sflag, size = 0x4, scoped, tag = 'scoped memory for tpu_custom_call.1']
    #allocation7 [shape = 'u8[1024]{0}', space=vmem, size = 0x400, scoped, tag = 'input window, operand 2, single buffered']
    #allocation8 [shape = 'u8[32768]{0}', space=vmem, size = 0x8000, scoped, tag = 'input window, operand 3, single buffered']
    #allocation9 [shape = 's32[1]{0}', space=sflag, size = 0x4, scoped, tag = 'scoped memory for tpu_custom_call.1']
    #allocation10 [shape = 'u8[512]{0}', space=vmem, size = 0x400, scoped, tag = 'input window, operand 4, single buffered']
    #allocation11 [shape = 'u8[8192]{0}', space=vmem, size = 0x2000, scoped, tag = 'output window, operand 0, single buffered']
    %10 = vsyncpa [#allocation3], 0
    %11 = vsyncpa [#allocation6], 0
    %12 = vsyncpa [#allocation9], 0
    %13 = vsyncpa [#allocation4], 0
    // Predicated region
    $region2: #{tpu_custom_call.1} parent=1 // pred_check
      _
    $region3: #{tpu_custom_call.1} parent=1 // pred_check_branch
      %15 = sbr.rel (0) target = $region5
    $region4: #{tpu_custom_call.1} parent=1 // pred_region
      %s17 = ssub.s32 128, 128
      %18 = vsyncadd [#allocation3], %s17
      %s19 = sshll.u32 [#allocation2], 4
      %s20 = int_to_ptr.vmem [resolvable:$true] %s19
      %25 = dma.hbm_to_vmem [thread:$0]  %s0, 128, %s20, [#allocation3], 64, 64, 4
    $region5: #{tpu_custom_call.1} parent=1 // pred_fallthru
      _
    // Predicated region
    $region6: #{tpu_custom_call.1} parent=1 // pred_check
      _
    $region7: #{tpu_custom_call.1} parent=1 // pred_check_branch
      %27 = sbr.rel (0) target = $region9
    $region8: #{tpu_custom_call.1} parent=1 // pred_region
      %s29 = ssub.s32 2048, 2048
      %30 = vsyncadd [#allocation6], %s29
      %s31 = sshll.u32 [#allocation5], 4
      %s32 = int_to_ptr.vmem [resolvable:$true] %s31
      %37 = dma.hbm_to_vmem [thread:$0]  %s1, 2048, %s32, [#allocation6], 128, 128, 8
    $region9: #{tpu_custom_call.1} parent=1 // pred_fallthru
      _
    // Predicated region
    $region10: #{tpu_custom_call.1} parent=1 // pred_check
      _
    $region11: #{tpu_custom_call.1} parent=1 // pred_check_branch
      %39 = sbr.rel (0) target = $region13
    $region12: #{tpu_custom_call.1} parent=1 // pred_region
      %s41 = ssub.s32 32, 32
      %42 = vsyncadd [#allocation6], %s41
      %s44 = sshll.u32 [#allocation7], 4
      %s45 = int_to_ptr.vmem [resolvable:$true] %s44
      %47 = dma.hbm_to_vmem [thread:$0]  %s2, 32, %s45, [#allocation6]
    $region13: #{tpu_custom_call.1} parent=1 // pred_fallthru
      _
    // Predicated region
    $region14: #{tpu_custom_call.1} parent=1 // pred_check
      _
    $region15: #{tpu_custom_call.1} parent=1 // pred_check_branch
      %49 = sbr.rel (0) target = $region17
    $region16: #{tpu_custom_call.1} parent=1 // pred_region
      %s51 = ssub.s32 1024, 1024
      %52 = vsyncadd [#allocation9], %s51
      %s53 = sshll.u32 [#allocation8], 4
      %s54 = int_to_ptr.vmem [resolvable:$true] %s53
      %59 = dma.hbm_to_vmem [thread:$0]  %s3, 1024, %s54, [#allocation9], 64, 64, 4
    $region17: #{tpu_custom_call.1} parent=1 // pred_fallthru
      _
    // Predicated region
    $region18: #{tpu_custom_call.1} parent=1 // pred_check
      _
    $region19: #{tpu_custom_call.1} parent=1 // pred_check_branch
      %61 = sbr.rel (0) target = $region21
    $region20: #{tpu_custom_call.1} parent=1 // pred_region
      %s63 = ssub.s32 16, 16
      %64 = vsyncadd [#allocation9], %s63
      %s66 = sshll.u32 [#allocation10], 4
      %s67 = int_to_ptr.vmem [resolvable:$true] %s66
      %69 = dma.hbm_to_vmem [thread:$0]  %s4, 16, %s67, [#allocation9]
    $region21: #{tpu_custom_call.1} parent=1 // pred_fallthru
      _
    // Predicated region
    $region22: #{tpu_custom_call.1} parent=1 // pred_check
      _
    $region23: #{tpu_custom_call.1} parent=1 // pred_check_branch
      %71 = sbr.rel (0) target = $region25
    $region24: #{tpu_custom_call.1} parent=1 // pred_region
      %72 = dma.done [#allocation3], 128
    $region25: #{tpu_custom_call.1} parent=1 // pred_fallthru
      _
    // Predicated region
    $region26: #{tpu_custom_call.1} parent=1 // pred_check
      _
    $region27: #{tpu_custom_call.1} parent=1 // pred_check_branch
      %74 = sbr.rel (0) target = $region29
    $region28: #{tpu_custom_call.1} parent=1 // pred_region
      %75 = dma.done [#allocation6], 2048
    $region29: #{tpu_custom_call.1} parent=1 // pred_fallthru
      _
    // Predicated region
    $region30: #{tpu_custom_call.1} parent=1 // pred_check
      _
    $region31: #{tpu_custom_call.1} parent=1 // pred_check_branch
      %77 = sbr.rel (0) target = $region33
    $region32: #{tpu_custom_call.1} parent=1 // pred_region
      %78 = dma.done [#allocation6], 32
    $region33: #{tpu_custom_call.1} parent=1 // pred_fallthru
      _
    // Predicated region
    $region34: #{tpu_custom_call.1} parent=1 // pred_check
      _
    $region35: #{tpu_custom_call.1} parent=1 // pred_check_branch
      %80 = sbr.rel (0) target = $region37
    $region36: #{tpu_custom_call.1} parent=1 // pred_region
      %81 = dma.done [#allocation9], 1024
    $region37: #{tpu_custom_call.1} parent=1 // pred_fallthru
      _
    // Predicated region
    $region38: #{tpu_custom_call.1} parent=1 // pred_check
      _
    $region39: #{tpu_custom_call.1} parent=1 // pred_check_branch
      %83 = sbr.rel (0) target = $region41
    $region40: #{tpu_custom_call.1} parent=1 // pred_region
      %84 = dma.done [#allocation9], 16
    $region41: #{tpu_custom_call.1} parent=1 // pred_fallthru
      _
    %v86 = vld [vmem:[#allocation2] sm:$0xf]
    %v87 = vld [vmem:[#allocation2 + $0x4] sm:$0xf]
    %v88 = vld [vmem:[#allocation5] sm:$0xff]
    %v89 = vld [vmem:[#allocation5 + $0x8] sm:$0xff]
    %v90 = vld [vmem:[#allocation5 + $0x10] sm:$0xff]
    %v91 = vld [vmem:[#allocation5 + $0x18] sm:$0xff]
    %v92 = vld [vmem:[#allocation5 + $0x20] sm:$0xff]
    %v93 = vld [vmem:[#allocation5 + $0x28] sm:$0xff]
    %v94 = vld [vmem:[#allocation5 + $0x30] sm:$0xff]
    %v95 = vld [vmem:[#allocation5 + $0x38] sm:$0xff]
    %v96 = vld [vmem:[#allocation5 + $0x40] sm:$0xff]
    %v97 = vld [vmem:[#allocation5 + $0x48] sm:$0xff]
    %v98 = vld [vmem:[#allocation5 + $0x50] sm:$0xff]
    %v99 = vld [vmem:[#allocation5 + $0x58] sm:$0xff]
    %v100 = vld [vmem:[#allocation5 + $0x60] sm:$0xff]
    %v101 = vld [vmem:[#allocation5 + $0x68] sm:$0xff]
    %v102 = vld [vmem:[#allocation5 + $0x70] sm:$0xff]
    %v103 = vld [vmem:[#allocation5 + $0x78] sm:$0xff]
    %v104 = vld [vmem:[#allocation7] sm:$0x3]
    %v106 = vlaneseq
    %v107 = vshrl.u32 %v106, 7
    %v108 = vsub.s32 0, %v107
    %v109 = vrot.slane %v104, %v108
    %v110 = vlaneseq
    %v111 = vshrl.u32 %v110, 7
    %v112 = vsub.s32 1, %v111
    %v113 = vrot.slane %v104, %v112
    %v118 = vunpack.c.l.b16 %v86
    %v119 = vunpack.c.l.b16 %v87
    %v120 = vpack.c.b16 %v119, %v118
    %v138 = vunpack.c.l.b16 %v88
    %v139 = vunpack.c.h.b16 %v88
    %v140 = vunpack.c.l.b16 %v89
    %v141 = vunpack.c.h.b16 %v89
    %v142 = vunpack.c.l.b16 %v90
    %v143 = vunpack.c.h.b16 %v90
    %v144 = vunpack.c.l.b16 %v91
    %v145 = vunpack.c.h.b16 %v91
    %v146 = vunpack.c.l.b16 %v92
    %v147 = vunpack.c.h.b16 %v92
    %v148 = vunpack.c.l.b16 %v93
    %v149 = vunpack.c.h.b16 %v93
    %v150 = vunpack.c.l.b16 %v94
    %v151 = vunpack.c.h.b16 %v94
    %v152 = vunpack.c.l.b16 %v95
    %v153 = vunpack.c.h.b16 %v95
    %v154 = vunpack.c.l.b16 %v96
    %v155 = vunpack.c.h.b16 %v96
    %v156 = vunpack.c.l.b16 %v97
    %v157 = vunpack.c.h.b16 %v97
    %v158 = vunpack.c.l.b16 %v98
    %v159 = vunpack.c.h.b16 %v98
    %v160 = vunpack.c.l.b16 %v99
    %v161 = vunpack.c.h.b16 %v99
    %v162 = vunpack.c.l.b16 %v100
    %v163 = vunpack.c.h.b16 %v100
    %v164 = vunpack.c.l.b16 %v101
    %v165 = vunpack.c.h.b16 %v101
    %v166 = vunpack.c.l.b16 %v102
    %v167 = vunpack.c.h.b16 %v102
    %v168 = vunpack.c.l.b16 %v103
    %v169 = vunpack.c.h.b16 %v103
    %v170 = vpack.c.b16 %v140, %v138
    %v171 = vpack.c.b16 %v141, %v139
    %v172 = vpack.c.b16 %v144, %v142
    %v173 = vpack.c.b16 %v145, %v143
    %v174 = vpack.c.b16 %v148, %v146
    %v175 = vpack.c.b16 %v149, %v147
    %v176 = vpack.c.b16 %v152, %v150
    %v177 = vpack.c.b16 %v153, %v151
    %v178 = vpack.c.b16 %v156, %v154
    %v179 = vpack.c.b16 %v157, %v155
    %v180 = vpack.c.b16 %v160, %v158
    %v181 = vpack.c.b16 %v161, %v159
    %v182 = vpack.c.b16 %v164, %v162
    %v183 = vpack.c.b16 %v165, %v163
    %v184 = vpack.c.b16 %v168, %v166
    %v185 = vpack.c.b16 %v169, %v167
    %202 = vmatprep.subr.bf16.mxu0 %v171
    %203 = vmatpush1.bf16.msra.mxu0 %v170
    %204 = vmatprep.subr.bf16.mxu0 %v173
    %205 = vmatpush1.bf16.msra.mxu0 %v172
    %206 = vmatprep.subr.bf16.mxu0 %v175
    %207 = vmatpush1.bf16.msra.mxu0 %v174
    %208 = vmatprep.subr.bf16.mxu0 %v177
    %209 = vmatpush1.bf16.msra.mxu0 %v176
    %210 = vmatprep.subr.bf16.mxu0 %v179
    %211 = vmatpush1.bf16.msra.mxu0 %v178
    %212 = vmatprep.subr.bf16.mxu0 %v181
    %213 = vmatpush1.bf16.msra.mxu0 %v180
    %214 = vmatprep.subr.bf16.mxu0 %v183
    %215 = vmatpush1.bf16.msra.mxu0 %v182
    %216 = vmatprep.subr.bf16.mxu0 %v185
    %217 = vmatpush1.bf16.msra.mxu0 %v184
    %218 = vmatprep.subr.bf16.mxu0 0
    %219 = vmatpush1.bf16.msra.mxu0 0
    %220 = vmatprep.subr.bf16.mxu0 0
    %221 = vmatpush1.bf16.msra.mxu0 0
    %222 = vmatprep.subr.bf16.mxu0 0
    %223 = vmatpush1.bf16.msra.mxu0 0
    %224 = vmatprep.subr.bf16.mxu0 0
    %225 = vmatpush1.bf16.msra.mxu0 0
    %226 = vmatprep.subr.bf16.mxu0 0
    %227 = vmatpush1.bf16.msra.mxu0 0
    %228 = vmatprep.subr.bf16.mxu0 0
    %229 = vmatpush1.bf16.msra.mxu0 0
    %230 = vmatprep.subr.bf16.mxu0 0
    %231 = vmatpush1.bf16.msra.mxu0 0
    %232 = vmatprep.subr.bf16.mxu0 0
    %233 = vmatpush1.bf16.msra.mxu0 0
    %234 = vmatprep.mubr.bf16.mxu0 0
    %235 = vmatmul.mubr.bf16.gmra.mrb[0].mxu0 %v120
    %v236 = vpop.f32.mrb[0].mxu0
    %v237 = vadd.f32 %v109, %v236
    %v238 = vpop.f32.mrb[0].mxu0
    %v239 = vadd.f32 %v113, %v238
    %v240 = vpop.f32.mrb[0].mxu0
    %v241 = vadd.f32 %v109, %v240
    %v242 = vpop.f32.mrb[0].mxu0
    %v243 = vadd.f32 %v113, %v242
    %244 = vdwg.mxu0
    %v245 = vmul.f32 %v237, 0.5
    %v246 = vmul.f32 %v241, 0.5
    %v247 = vmul.f32 %v237, 0.70710677
    %v248 = vmul.f32 %v241, 0.70710677
    %v249 = verf.f32.pop %v247
    %v250 = verf.f32.pop %v248
    %v251 = vadd.f32 %v249, 1.0
    %v252 = vadd.f32 %v250, 1.0
    %v253 = vmul.f32 %v245, %v251
    %v254 = vmul.f32 %v246, %v252
    %v255 = vmul.f32 %v253, %v239
    %v256 = vmul.f32 %v254, %v243
    %v257 = vpack.c.bf16 %v256, %v255
    %v258 = vld [vmem:[#allocation8] sm:$0xf]
    %v259 = vld [vmem:[#allocation8 + $0x4] sm:$0xf]
    %v260 = vld [vmem:[#allocation8 + $0x8] sm:$0xf]
    %v261 = vld [vmem:[#allocation8 + $0xc] sm:$0xf]
    %v262 = vld [vmem:[#allocation8 + $0x10] sm:$0xf]
    %v263 = vld [vmem:[#allocation8 + $0x14] sm:$0xf]
    %v264 = vld [vmem:[#allocation8 + $0x18] sm:$0xf]
    %v265 = vld [vmem:[#allocation8 + $0x1c] sm:$0xf]
    %v266 = vld [vmem:[#allocation8 + $0x20] sm:$0xf]
    %v267 = vld [vmem:[#allocation8 + $0x24] sm:$0xf]
    %v268 = vld [vmem:[#allocation8 + $0x28] sm:$0xf]
    %v269 = vld [vmem:[#allocation8 + $0x2c] sm:$0xf]
    %v270 = vld [vmem:[#allocation8 + $0x30] sm:$0xf]
    %v271 = vld [vmem:[#allocation8 + $0x34] sm:$0xf]
    %v272 = vld [vmem:[#allocation8 + $0x38] sm:$0xf]
    %v273 = vld [vmem:[#allocation8 + $0x3c] sm:$0xf]
    %v274 = vld [vmem:[#allocation10] sm:$0x1]
    %v276 = vlaneseq
    %v277 = vshrl.u32 %v276, 7
    %v278 = vsub.s32 0, %v277
    %v279 = vrot.slane %v274, %v278
    %v297 = vunpack.c.l.b16 %v258
    %v298 = vunpack.c.l.b16 %v259
    %v299 = vunpack.c.l.b16 %v260
    %v300 = vunpack.c.l.b16 %v261
    %v301 = vunpack.c.l.b16 %v262
    %v302 = vunpack.c.l.b16 %v263
    %v303 = vunpack.c.l.b16 %v264
    %v304 = vunpack.c.l.b16 %v265
    %v305 = vunpack.c.l.b16 %v266
    %v306 = vunpack.c.l.b16 %v267
    %v307 = vunpack.c.l.b16 %v268
    %v308 = vunpack.c.l.b16 %v269
    %v309 = vunpack.c.l.b16 %v270
    %v310 = vunpack.c.l.b16 %v271
    %v311 = vunpack.c.l.b16 %v272
    %v312 = vunpack.c.l.b16 %v273
    %v313 = vpack.c.b16 %v298, %v297
    %v314 = vpack.c.b16 %v300, %v299
    %v315 = vpack.c.b16 %v302, %v301
    %v316 = vpack.c.b16 %v304, %v303
    %v317 = vpack.c.b16 %v306, %v305
    %v318 = vpack.c.b16 %v308, %v307
    %v319 = vpack.c.b16 %v310, %v309
    %v320 = vpack.c.b16 %v312, %v311
    %329 = vmatprep.subr.bf16.mxu0 0
    %330 = vmatpush1.bf16.msra.mxu0 %v313
    %331 = vmatprep.subr.bf16.mxu0 0
    %332 = vmatpush1.bf16.msra.mxu0 %v314
    %333 = vmatprep.subr.bf16.mxu0 0
    %334 = vmatpush1.bf16.msra.mxu0 %v315
    %335 = vmatprep.subr.bf16.mxu0 0
    %336 = vmatpush1.bf16.msra.mxu0 %v316
    %337 = vmatprep.subr.bf16.mxu0 0
    %338 = vmatpush1.bf16.msra.mxu0 %v317
    %339 = vmatprep.subr.bf16.mxu0 0
    %340 = vmatpush1.bf16.msra.mxu0 %v318
    %341 = vmatprep.subr.bf16.mxu0 0
    %342 = vmatpush1.bf16.msra.mxu0 %v319
    %343 = vmatprep.subr.bf16.mxu0 0
    %344 = vmatpush1.bf16.msra.mxu0 %v320
    %345 = vmatprep.subr.bf16.mxu0 0
    %346 = vmatpush1.bf16.msra.mxu0 0
    %347 = vmatprep.subr.bf16.mxu0 0
    %348 = vmatpush1.bf16.msra.mxu0 0
    %349 = vmatprep.subr.bf16.mxu0 0
    %350 = vmatpush1.bf16.msra.mxu0 0
    %351 = vmatprep.subr.bf16.mxu0 0
    %352 = vmatpush1.bf16.msra.mxu0 0
    %353 = vmatprep.subr.bf16.mxu0 0
    %354 = vmatpush1.bf16.msra.mxu0 0
    %355 = vmatprep.subr.bf16.mxu0 0
    %356 = vmatpush1.bf16.msra.mxu0 0
    %357 = vmatprep.subr.bf16.mxu0 0
    %358 = vmatpush1.bf16.msra.mxu0 0
    %359 = vmatprep.subr.bf16.mxu0 0
    %360 = vmatpush1.bf16.msra.mxu0 0
    %361 = vmatprep.mubr.bf16.mxu0 0
    %362 = vmatmul.mubr.bf16.gmra.mrb[0].mxu0 %v257
    %v363 = vpop.f32.mrb[0].mxu0
    %v364 = vadd.f32 %v279, %v363
    %v365 = vpop.f32.mrb[0].mxu0
    %v366 = vpop.f32.mrb[0].mxu0
    %v367 = vadd.f32 %v279, %v366
    %v368 = vpop.f32.mrb[0].mxu0
    %369 = vdwg.mxu0
    %370 = vst [vmem:[#allocation11] sm:$0xff] %v364
    %371 = vst [vmem:[#allocation11 + $0x8] sm:$0xff] %v367
    // Predicated region
    $region42: #{tpu_custom_call.1} parent=1 // pred_check
      _
    $region43: #{tpu_custom_call.1} parent=1 // pred_check_branch
      %373 = sbr.rel (0) target = $region45
    $region44: #{tpu_custom_call.1} parent=1 // pred_region
      %s375 = ssub.s32 256, 256
      %376 = vsyncadd [#allocation4], %s375
      %s377 = sshll.u32 [#allocation11], 4
      %s378 = int_to_ptr.vmem [resolvable:$true] %s377
      %383 = dma.vmem_to_hbm [thread:$0]  %s378, 256, %s5, [#allocation4], 128, 128, 8
    $region45: #{tpu_custom_call.1} parent=1 // pred_fallthru
      _
    // Predicated region
    $region46: #{tpu_custom_call.1} parent=1 // pred_check
      _
    $region47: #{tpu_custom_call.1} parent=1 // pred_check_branch
      %385 = sbr.rel (0) target = $region49
    $region48: #{tpu_custom_call.1} parent=1 // pred_region
      %386 = dma.done [#allocation4], 256
    $region49: #{tpu_custom_call.1} parent=1 // pred_fallthru
      _
    %387 = vsyncpa [#allocation3], 1
    %388 = vsyncpa [#allocation6], 1
    %389 = vsyncpa [#allocation9], 1
    %390 = vsyncpa [#allocation4], 1

</llo_original>
